<compile_context>
chip_gen: v6e
topology: v6e:2x2x1
jax: 0.10.0
libtpu: 0.0.40
codegen_flags: <defaults>
</compile_context>

<pallas_src>
import functools

import jax
import jax.numpy as jnp
import numpy as np
from jax.experimental import pallas as pl
from jax.experimental.pallas import tpu as pltpu

H, W = 6, 7
S = H * W                 # 42 spatial positions
F = 2 * S                 # 84 flattened features (2 conv channels)
LANES = 128               # packed feature row: lanes 0:42 ch0, 42:84 ch1, 84:128 zero
N_ACTIONS = 7
EPS = 1e-5


def policy_head_kernel(x_ref, wconv_ref, wl_ref, bl_ref, lv_ref,
                       out_ref, cache_ref, stats_ref, affine_ref,
                       *, inv_count, tb_mult_of_8):
    # x_ref:      (TB, C*S)   input tile (free NCHW->(N, C*H*W) reshape)
    # wconv_ref:  (C*S, 128)  1x1 conv as a matmul that also packs/flattens the output;
    #                         columns 84:128 are zero
    # wl_ref:     (128, 7)    Linear(84, 7) weights, rows 84:128 zero-padded
    # bl_ref:     (1, 7)      Linear bias
    # lv_ref:     (6, 128)    per-lane constants: row0 conv bias, row1 BN beta,
    #                         rows2-3 channel masks, rows4-5 gamma-scaled channel masks
    # out_ref:    (TB, 7)     softmax probabilities
    # cache_ref:  (T, TB, 128) packed conv-output cache (persists across grid steps)
    # stats_ref:  (2, 8, 128) per-(sublane, lane) partial [sum, sum-of-squares]
    # affine_ref: (2, 128)    folded per-lane BN [scale; shift]
    p = pl.program_id(0)      # 0: conv + global BN stats, 1: normalize/linear/softmax
    t = pl.program_id(1)      # batch tile

    @pl.when(jnp.logical_and(p == 0, t == 0))
    def _init_stats():
        stats_ref[...] = jnp.zeros_like(stats_ref)

    @pl.when(p == 0)
    def _conv_and_stats():
        x = x_ref[...].astype(jnp.float32)                          # (TB, C*S)
        # 1x1 conv + channel packing in one MXU matmul (output lanes 84:128 stay 0).
        z = jnp.dot(x, wconv_ref[...], preferred_element_type=jnp.float32)
        z = z + lv_ref[0:1, :]                                      # conv bias per lane
        cache_ref[t, :, :] = z.astype(cache_ref.dtype)
        # Deferred BN statistics: accumulate per-(sublane, lane) partials with pure VPU
        # adds; the cross-lane/sublane collapse happens once, at the start of phase 1.
        if tb_mult_of_8:
            zz = z.reshape(-1, 8, LANES)
            stats_ref[0, :, :] += jnp.sum(zz, axis=0)
            stats_ref[1, :, :] += jnp.sum(zz * zz, axis=0)
        else:  # ragged single-tile fallback (TB not a multiple of 8)
            stats_ref[0, 0:1, :] += jnp.sum(z, axis=0, keepdims=True)
            stats_ref[1, 0:1, :] += jnp.sum(z * z, axis=0, keepdims=True)

    @pl.when(jnp.logical_and(p == 1, t == 0))
    def _finalize_bn():
        lane_sum = jnp.sum(stats_ref[0, :, :], axis=0, keepdims=True)   # (1, 128)
        lane_sq = jnp.sum(stats_ref[1, :, :], axis=0, keepdims=True)
        beta = lv_ref[1:2, :]
        mask0, mask1 = lv_ref[2:3, :], lv_ref[3:4, :]
        gsel0, gsel1 = lv_ref[4:5, :], lv_ref[5:6, :]
        sum0 = jnp.sum(lane_sum * mask0, axis=1, keepdims=True)         # (1, 1)
        sum1 = jnp.sum(lane_sum * mask1, axis=1, keepdims=True)
        sq0 = jnp.sum(lane_sq * mask0, axis=1, keepdims=True)
        sq1 = jnp.sum(lane_sq * mask1, axis=1, keepdims=True)
        mean0, mean1 = sum0 * inv_count, sum1 * inv_count
        var0 = jnp.maximum(sq0 * inv_count - mean0 * mean0, 0.0)        # clamp >= 0
        var1 = jnp.maximum(sq1 * inv_count - mean1 * mean1, 0.0)
        istd0 = jax.lax.rsqrt(var0 + EPS)
        istd1 = jax.lax.rsqrt(var1 + EPS)
        scale = gsel0 * istd0 + gsel1 * istd1                           # (1, 128)
        shift = beta - (gsel0 * (mean0 * istd0) + gsel1 * (mean1 * istd1))
        affine_ref[...] = jnp.concatenate([scale, shift], axis=0)

    @pl.when(p == 1)
    def _apply_linear_softmax():
        # BN affine + ReLU on the cached packed conv output (x is not re-read).
        y = cache_ref[t, :, :].astype(jnp.float32)
        y = jnp.maximum(y * affine_ref[0:1, :] + affine_ref[1:2, :], 0.0)  # (TB, 128)
        # Single K=128 MXU matmul (zero-padded Linear weight) + bias.
        logits = jnp.dot(y, wl_ref[...], preferred_element_type=jnp.float32) + bl_ref[...]
        m = jnp.max(logits, axis=1, keepdims=True)
        e = jnp.exp(logits - m)
        denom = jnp.sum(e, axis=1, keepdims=True)
        out_ref[...] = (e * pl.reciprocal(denom, approx=False)).astype(out_ref.dtype)


def _plan_tiles(n, c, x_dtype, cache_dtype, max_batch_tile, vmem_cap_bytes):
    """Pick batch tile TB against a total, dtype-aware VMEM budget and return
    (TB, num_tiles, vmem_limit_bytes)."""
    cs = c * S
    x_item = jnp.dtype(x_dtype).itemsize
    cache_item = jnp.dtype(cache_dtype).itemsize
    x_row_bytes = (-(-cs // 128) * 128) * x_item            # lane-padded x row
    # VMEM that does not scale with the batch tile:
    cache_bytes = n * LANES * cache_item                    # packed O(N) conv cache
    const_bytes = 2 * ((-(-cs // 8) * 8) * 128 * 4          # wconv (double-buffered)
                       + 128 * 128 * 4                      # wl (7 -> 128 lane pad)
                       + 8 * 128 * 4                        # bl
                       + 8 * 128 * 4)                       # lanevecs
    scratch_bytes = (2 * 8 + 8) * 128 * 4                   # stats + affine
    margin = 2 * 1024 * 1024                                # compiler-internal headroom
    fixed = cache_bytes + const_bytes + scratch_bytes + margin
    # VMEM per batch row that scales with TB (double-buffered x and out tiles):
    per_row = 2 * x_row_bytes + 2 * LANES * 4
    budget = vmem_cap_bytes - fixed
    if budget < 8 * per_row:
        # TODO(synk): for very large N spill the conv cache to HBM (pl.ANY scratch +
        # manual DMA) or split into a stats pass + apply pass instead of raising.
        raise ValueError(f"PolicyHead kernel: N={n} conv cache + tiles do not fit in "
                         f"{vmem_cap_bytes} bytes of VMEM")
    cap = min(max_batch_tile, n, (budget // per_row) // 8 * 8)
    tb = None
    for cand in range(8, cap + 1, 8):                       # largest mult-of-8 divisor
        if n % cand == 0:
            tb = cand
    if tb is None:                                          # ragged N: single tile
        if n * per_row > budget:
            raise ValueError(f"PolicyHead kernel: N={n} has no usable batch tiling")
        tb = n
    vmem_limit = int(min(vmem_cap_bytes, max(32 * 1024 * 1024, fixed + tb * per_row)))
    return tb, n // tb, vmem_limit


def policy_head_forward(x_nchw, params, *, max_batch_tile=1024,
                        vmem_cap_bytes=64 * 1024 * 1024, cache_dtype=jnp.float32):
    """PolicyHead forward. x_nchw: (N, C, 6, 7), float32 or bfloat16 (bf16 halves the
    dominant HBM read); cache_dtype=bfloat16 halves the O(N) VMEM conv cache."""
    N, C, Hx, Wx = x_nchw.shape
    assert (Hx, Wx) == (H, W), "PolicyHead assumes a 6x7 board (Linear(84, 7))"
    CS = C * S

    TB, T, vmem_limit = _plan_tiles(N, C, x_nchw.dtype, cache_dtype,
                                    max_batch_tile, vmem_cap_bytes)

    # Free reshape (merges contiguous trailing dims) -- no HBM transpose/pad pass on x.
    x2 = x_nchw.reshape(N, CS)

    f32 = jnp.float32
    conv_w = params["conv_w"].reshape(2, C).astype(f32)
    # 1x1 conv as a (C*S, 128) matmul that also emits the PyTorch flatten order:
    #   wconv[c*S + s, k*S + s] = conv_w[k, c]; columns 84:128 are zero.
    eye_s = jnp.eye(S, dtype=f32)
    blocks = conv_w.T[:, :, None, None] * eye_s[None, None]             # (C, 2, S, S)
    wconv = jnp.pad(blocks.transpose(0, 2, 1, 3).reshape(CS, F),
                    ((0, 0), (0, LANES - F)))                           # (C*S, 128)

    # Linear(84, 7) weights zero-padded to the packed 128-lane layout.
    wl = jnp.pad(params["lin_w"].astype(f32).T, ((0, LANES - F), (0, 0)))  # (128, 7)
    bl = params["lin_b"].reshape(1, N_ACTIONS).astype(f32)

    mask_np = np.zeros((2, LANES), np.float32)
    mask_np[0, 0:S] = 1.0
    mask_np[1, S:F] = 1.0
    mask = jnp.asarray(mask_np)                                          # (2, 128)
    cbias_lane = params["conv_b"].astype(f32) @ mask                     # (128,)
    beta_lane = params["bn_b"].astype(f32) @ mask
    gsel = mask * params["bn_w"].astype(f32)[:, None]                    # (2, 128)
    lanevecs = jnp.concatenate(
        [cbias_lane[None], beta_lane[None], mask, gsel], axis=0)         # (6, 128)

    kernel = functools.partial(policy_head_kernel,
                               inv_count=1.0 / float(N * S),
                               tb_mult_of_8=(TB % 8 == 0))

    def x_index_map(p, t):
        # Phase 1 pins x to the LAST phase-0 block: the block index never changes at
        # the phase transition, so x is DMA'd from HBM exactly once over the whole grid.
        return ((1 - p) * t + p * (T - 1), 0)

    return pl.pallas_call(
        kernel,
        out_shape=jax.ShapeDtypeStruct((N, N_ACTIONS), jnp.float32),
        grid=(2, T),   # (phase, batch tile); phase 0 = conv+stats, phase 1 = apply
        in_specs=[
            pl.BlockSpec((TB, CS), x_index_map),
            pl.BlockSpec((CS, LANES), lambda p, t: (0, 0)),
            pl.BlockSpec((LANES, N_ACTIONS), lambda p, t: (0, 0)),
            pl.BlockSpec((1, N_ACTIONS), lambda p, t: (0, 0)),
            pl.BlockSpec((6, LANES), lambda p, t: (0, 0)),
        ],
        # Phase 0 never writes the output; pinning its block index at 0 avoids
        # write-backs of untouched blocks (first real write happens at step (1, 0)).
        out_specs=pl.BlockSpec((TB, N_ACTIONS), lambda p, t: (p * t, 0)),
        scratch_shapes=[
            pltpu.VMEM((T, TB, LANES), cache_dtype),   # packed conv-output cache
            pltpu.VMEM((2, 8, LANES), jnp.float32),    # BN partial-sum accumulators
            pltpu.VMEM((2, LANES), jnp.float32),       # folded per-lane BN scale/shift
        ],
        compiler_params=pltpu.CompilerParams(
            # Both axes sequential: phase 1 depends on all of phase 0, and the batch
            # axis carries the cross-tile BN-stats reduction (cannot be "parallel").
            # TODO(synk): on v7x (2 TCs) split into a stats pass + apply pass with the
            # batch axis "parallel" if a profile shows overhead-/compute-bound behavior.
            dimension_semantics=("arbitrary", "arbitrary"),
            vmem_limit_bytes=vmem_limit),
    )(x2, wconv, wl, bl, lanevecs)


def policy_head_reference(x_nchw, params):
    """Pure-JAX reference mirroring the PyTorch forward (training-mode BN)."""
    N, C, _, _ = x_nchw.shape
    w = params["conv_w"].reshape(2, C)
    conv = jnp.einsum('nchw,kc->nkhw', x_nchw, w) + params["conv_b"].reshape(1, 2, 1, 1)
    mean = conv.mean(axis=(0, 2, 3), keepdims=True)
    var = ((conv - mean) ** 2).mean(axis=(0, 2, 3), keepdims=True)
    y = (conv - mean) / jnp.sqrt(var + EPS)
    y = y * params["bn_w"].reshape(1, 2, 1, 1) + params["bn_b"].reshape(1, 2, 1, 1)
    y = jnp.maximum(y, 0.0)
    flat = y.reshape(N, F)
    logits = flat @ params["lin_w"].T + params["lin_b"]
    return jax.nn.softmax(logits, axis=1)


def init_params(key, in_channels):
    ks = jax.random.split(key, 6)
    return {
        "conv_w": 0.1 * jax.random.normal(ks[0], (2, in_channels, 1, 1), jnp.float32),
        "conv_b": 0.1 * jax.random.normal(ks[1], (2,), jnp.float32),
        "bn_w": 1.0 + 0.1 * jax.random.normal(ks[2], (2,), jnp.float32),
        "bn_b": 0.1 * jax.random.normal(ks[3], (2,), jnp.float32),
        "lin_w": 0.1 * jax.random.normal(ks[4], (N_ACTIONS, F), jnp.float32),
        "lin_b": 0.1 * jax.random.normal(ks[5], (N_ACTIONS,), jnp.float32),
    }


if __name__ == "__main__":
    key = jax.random.PRNGKey(0)
    k_x, k_p = jax.random.split(key)

    batch, in_channels = 16, 8
    x = jax.random.normal(k_x, (batch, in_channels, H, W), jnp.float32)  # NCHW like PyTorch
    params = init_params(k_p, in_channels)
    ref = jax.block_until_ready(policy_head_reference(x, params))

    # f32 activations; max_batch_tile=8 -> 2 batch tiles (grid (2, 2)) so the
    # cross-tile BatchNorm statistics accumulation is exercised.
    out = jax.block_until_ready(policy_head_forward(x, params, max_batch_tile=8))
    np.testing.assert_allclose(np.asarray(out), np.asarray(ref), rtol=5e-4, atol=1e-5)
    np.testing.assert_allclose(np.asarray(out).sum(axis=1), np.ones(batch), rtol=1e-5, atol=1e-5)

    # bf16 conv cache (halves the O(N) VMEM cache, review item for v7x headroom).
    out_c16 = jax.block_until_ready(
        policy_head_forward(x, params, max_batch_tile=8, cache_dtype=jnp.bfloat16))
    np.testing.assert_allclose(np.asarray(out_c16), np.asarray(ref), rtol=2e-2, atol=1e-3)

    # bf16 activations (halves HBM traffic of the dominant x read); in-kernel math is f32.
    x_bf16 = x.astype(jnp.bfloat16)
    out_bf16 = jax.block_until_ready(policy_head_forward(x_bf16, params))
    ref_bf16 = jax.block_until_ready(policy_head_reference(x_bf16.astype(jnp.float32), params))
    np.testing.assert_allclose(np.asarray(out_bf16), np.asarray(ref_bf16), rtol=2e-3, atol=2e-4)

    print("KERNEL_OK")
</pallas_src>

<mosaic_0001>
module attributes {stable_mosaic.version = 11 : i64} {
  func.func @policy_head_kernel(%arg0: i32, %arg1: i32, %arg2: memref<8x336xf32, #tpu.memory_space<vmem>>, %arg3: memref<336x128xf32, #tpu.memory_space<vmem>>, %arg4: memref<128x7xf32, #tpu.memory_space<vmem>>, %arg5: memref<1x7xf32, #tpu.memory_space<vmem>>, %arg6: memref<6x128xf32, #tpu.memory_space<vmem>>, %arg7: memref<8x7xf32, #tpu.memory_space<vmem>>, %arg8: memref<2x8x128xf32, #tpu.memory_space<vmem>>, %arg9: memref<2x8x128xf32, #tpu.memory_space<vmem>>, %arg10: memref<2x128xf32, #tpu.memory_space<vmem>>) attributes {dimension_semantics = [#tpu.dimension_semantics<arbitrary>, #tpu.dimension_semantics<arbitrary>], iteration_bounds = array<i64: 2, 2>, scalar_prefetch = 0 : i64, scratch_operands = 3 : i64, tpu.core_type = #tpu.core_type<tc>, window_params = [{transform_indices = @transform_0, window_bounds = array<i64: 8, 336>}, {pipeline_mode = #tpu.pipeline_mode<synchronous>, transform_indices = @transform_1, window_bounds = array<i64: 336, 128>}, {pipeline_mode = #tpu.pipeline_mode<synchronous>, transform_indices = @transform_2, window_bounds = array<i64: 128, 7>}, {pipeline_mode = #tpu.pipeline_mode<synchronous>, transform_indices = @transform_3, window_bounds = array<i64: 1, 7>}, {pipeline_mode = #tpu.pipeline_mode<synchronous>, transform_indices = @transform_4, window_bounds = array<i64: 6, 128>}, {transform_indices = @transform_5, window_bounds = array<i64: 8, 7>}]} {
    %c0_i32 = arith.constant 0 : i32
    %0 = arith.cmpi eq, %arg0, %c0_i32 : i32
    %c0_i32_0 = arith.constant 0 : i32
    %1 = arith.cmpi eq, %arg1, %c0_i32_0 : i32
    %2 = arith.andi %0, %1 : i1
    %3 = arith.extui %2 : i1 to i32
    %c0_i32_1 = arith.constant 0 : i32
    %4 = arith.cmpi ne, %3, %c0_i32_1 : i32
    scf.if %4 {
      %cst = arith.constant 0.000000e+00 : f32
      %16 = vector.broadcast %cst : f32 to vector<2x8x128xf32>
      %c0 = arith.constant 0 : index
      %c0_8 = arith.constant 0 : index
      %c0_9 = arith.constant 0 : index
      %17 = vector.load %arg9[%c0, %c0_8, %c0_9] : memref<2x8x128xf32, #tpu.memory_space<vmem>>, vector<2x8x128xf32>
      tpu.vector_store %arg9[%c0, %c0_8, %c0_9], %16 {strides = array<i32>} : memref<2x8x128xf32, #tpu.memory_space<vmem>>, vector<2x8x128xf32>,
    } else {
    }
    %c0_i32_2 = arith.constant 0 : i32
    %5 = arith.cmpi eq, %arg0, %c0_i32_2 : i32
    %6 = arith.extui %5 : i1 to i32
    %c0_i32_3 = arith.constant 0 : i32
    %7 = arith.cmpi ne, %6, %c0_i32_3 : i32
    scf.if %7 {
      %c0 = arith.constant 0 : index
      %c0_8 = arith.constant 0 : index
      %16 = vector.load %arg2[%c0, %c0_8] : memref<8x336xf32, #tpu.memory_space<vmem>>, vector<8x336xf32>
      %c0_9 = arith.constant 0 : index
      %c0_10 = arith.constant 0 : index
      %17 = vector.load %arg3[%c0_9, %c0_10] : memref<336x128xf32, #tpu.memory_space<vmem>>, vector<336x128xf32>
      %cst = arith.constant dense<0.000000e+00> : vector<8x128xf32>
      %18 = tpu.matmul %16, %17, %cst {dimension_numbers = #tpu.dot_dimension_numbers<[1], [0], [0], [1], [0, 0, 1, 1], [], []>} : vector<8x336xf32>, vector<336x128xf32>, vector<8x128xf32> -> vector<8x128xf32>
      %c0_11 = arith.constant 0 : index
      %c0_12 = arith.constant 0 : index
      %19 = vector.load %arg6[%c0_11, %c0_12] : memref<6x128xf32, #tpu.memory_space<vmem>>, vector<1x128xf32>
      %20 = vector.broadcast %19 : vector<1x128xf32> to vector<8x128xf32>
      %21 = arith.addf %18, %20 : vector<8x128xf32>
      %22 = arith.index_cast %arg1 : i32 to index
      %c0_13 = arith.constant 0 : index
      %c0_14 = arith.constant 0 : index
      %23 = vector.load %arg8[%22, %c0_13, %c0_14] : memref<2x8x128xf32, #tpu.memory_space<vmem>>, vector<1x8x128xf32>
      %24 = vector.shape_cast %23 : vector<1x8x128xf32> to vector<8x128xf32>
      %25 = vector.shape_cast %21 : vector<8x128xf32> to vector<1x8x128xf32>
      tpu.vector_store %arg8[%22, %c0_13, %c0_14], %25 {strides = array<i32>} : memref<2x8x128xf32, #tpu.memory_space<vmem>>, vector<1x8x128xf32>,
      %26 = vector.shape_cast %21 : vector<8x128xf32> to vector<1x8x128xf32>
      %c0_15 = arith.constant 0 : index
      %c0_16 = arith.constant 0 : index
      %c0_17 = arith.constant 0 : index
      %27 = vector.load %arg9[%c0_15, %c0_16, %c0_17] : memref<2x8x128xf32, #tpu.memory_space<vmem>>, vector<1x8x128xf32>
      %28 = vector.shape_cast %27 : vector<1x8x128xf32> to vector<8x128xf32>
      %cst_18 = arith.constant dense<0.000000e+00> : vector<8x128xf32>
      %29 = vector.multi_reduction <add>, %26, %cst_18 [0] : vector<1x8x128xf32> to vector<8x128xf32>
      %30 = arith.addf %28, %29 : vector<8x128xf32>
      %c0_19 = arith.constant 0 : index
      %c0_20 = arith.constant 0 : index
      %c0_21 = arith.constant 0 : index
      %31 = vector.load %arg9[%c0_19, %c0_20, %c0_21] : memref<2x8x128xf32, #tpu.memory_space<vmem>>, vector<1x8x128xf32>
      %32 = vector.shape_cast %31 : vector<1x8x128xf32> to vector<8x128xf32>
      %33 = vector.shape_cast %30 : vector<8x128xf32> to vector<1x8x128xf32>
      tpu.vector_store %arg9[%c0_19, %c0_20, %c0_21], %33 {strides = array<i32>} : memref<2x8x128xf32, #tpu.memory_space<vmem>>, vector<1x8x128xf32>,
      %c1 = arith.constant 1 : index
      %c0_22 = arith.constant 0 : index
      %c0_23 = arith.constant 0 : index
      %34 = vector.load %arg9[%c1, %c0_22, %c0_23] : memref<2x8x128xf32, #tpu.memory_space<vmem>>, vector<1x8x128xf32>
      %35 = vector.shape_cast %34 : vector<1x8x128xf32> to vector<8x128xf32>
      %36 = arith.mulf %26, %26 : vector<1x8x128xf32>
      %cst_24 = arith.constant dense<0.000000e+00> : vector<8x128xf32>
      %37 = vector.multi_reduction <add>, %36, %cst_24 [0] : vector<1x8x128xf32> to vector<8x128xf32>
      %38 = arith.addf %35, %37 : vector<8x128xf32>
      %c1_25 = arith.constant 1 : index
      %c0_26 = arith.constant 0 : index
      %c0_27 = arith.constant 0 : index
      %39 = vector.load %arg9[%c1_25, %c0_26, %c0_27] : memref<2x8x128xf32, #tpu.memory_space<vmem>>, vector<1x8x128xf32>
      %40 = vector.shape_cast %39 : vector<1x8x128xf32> to vector<8x128xf32>
      %41 = vector.shape_cast %38 : vector<8x128xf32> to vector<1x8x128xf32>
      tpu.vector_store %arg9[%c1_25, %c0_26, %c0_27], %41 {strides = array<i32>} : memref<2x8x128xf32, #tpu.memory_space<vmem>>, vector<1x8x128xf32>,
    } else {
    }
    %c1_i32 = arith.constant 1 : i32
    %8 = arith.cmpi eq, %arg0, %c1_i32 : i32
    %c0_i32_4 = arith.constant 0 : i32
    %9 = arith.cmpi eq, %arg1, %c0_i32_4 : i32
    %10 = arith.andi %8, %9 : i1
    %11 = arith.extui %10 : i1 to i32
    %c0_i32_5 = arith.constant 0 : i32
    %12 = arith.cmpi ne, %11, %c0_i32_5 : i32
    scf.if %12 {
      %c0 = arith.constant 0 : index
      %c0_8 = arith.constant 0 : index
      %c0_9 = arith.constant 0 : index
      %16 = vector.load %arg9[%c0, %c0_8, %c0_9] : memref<2x8x128xf32, #tpu.memory_space<vmem>>, vector<1x8x128xf32>
      %17 = vector.shape_cast %16 : vector<1x8x128xf32> to vector<8x128xf32>
      %cst = arith.constant dense<0.000000e+00> : vector<128xf32>
      %18 = vector.multi_reduction <add>, %17, %cst [0] : vector<8x128xf32> to vector<128xf32>
      %19 = vector.shape_cast %18 : vector<128xf32> to vector<1x128xf32>
      %c1 = arith.constant 1 : index
      %c0_10 = arith.constant 0 : index
      %c0_11 = arith.constant 0 : index
      %20 = vector.load %arg9[%c1, %c0_10, %c0_11] : memref<2x8x128xf32, #tpu.memory_space<vmem>>, vector<1x8x128xf32>
      %21 = vector.shape_cast %20 : vector<1x8x128xf32> to vector<8x128xf32>
      %cst_12 = arith.constant dense<0.000000e+00> : vector<128xf32>
      %22 = vector.multi_reduction <add>, %21, %cst_12 [0] : vector<8x128xf32> to vector<128xf32>
      %23 = vector.shape_cast %22 : vector<128xf32> to vector<1x128xf32>
      %c1_13 = arith.constant 1 : index
      %c0_14 = arith.constant 0 : index
      %24 = vector.load %arg6[%c1_13, %c0_14] : memref<6x128xf32, #tpu.memory_space<vmem>>, vector<1x128xf32>
      %c2 = arith.constant 2 : index
      %c0_15 = arith.constant 0 : index
      %25 = vector.load %arg6[%c2, %c0_15] : memref<6x128xf32, #tpu.memory_space<vmem>>, vector<1x128xf32>
      %c3 = arith.constant 3 : index
      %c0_16 = arith.constant 0 : index
      %26 = vector.load %arg6[%c3, %c0_16] : memref<6x128xf32, #tpu.memory_space<vmem>>, vector<1x128xf32>
      %c4 = arith.constant 4 : index
      %c0_17 = arith.constant 0 : index
      %27 = vector.load %arg6[%c4, %c0_17] : memref<6x128xf32, #tpu.memory_space<vmem>>, vector<1x128xf32>
      %c5 = arith.constant 5 : index
      %c0_18 = arith.constant 0 : index
      %28 = vector.load %arg6[%c5, %c0_18] : memref<6x128xf32, #tpu.memory_space<vmem>>, vector<1x128xf32>
      %29 = arith.mulf %19, %25 : vector<1x128xf32>
      %cst_19 = arith.constant dense<0.000000e+00> : vector<1xf32>
      %30 = vector.multi_reduction <add>, %29, %cst_19 [1] : vector<1x128xf32> to vector<1xf32>
      %31 = vector.shape_cast %30 : vector<1xf32> to vector<1x1xf32>
      %32 = arith.mulf %19, %26 : vector<1x128xf32>
      %cst_20 = arith.constant dense<0.000000e+00> : vector<1xf32>
      %33 = vector.multi_reduction <add>, %32, %cst_20 [1] : vector<1x128xf32> to vector<1xf32>
      %34 = vector.shape_cast %33 : vector<1xf32> to vector<1x1xf32>
      %35 = arith.mulf %23, %25 : vector<1x128xf32>
      %cst_21 = arith.constant dense<0.000000e+00> : vector<1xf32>
      %36 = vector.multi_reduction <add>, %35, %cst_21 [1] : vector<1x128xf32> to vector<1xf32>
      %37 = vector.shape_cast %36 : vector<1xf32> to vector<1x1xf32>
      %38 = arith.mulf %23, %26 : vector<1x128xf32>
      %cst_22 = arith.constant dense<0.000000e+00> : vector<1xf32>
      %39 = vector.multi_reduction <add>, %38, %cst_22 [1] : vector<1x128xf32> to vector<1xf32>
      %40 = vector.shape_cast %39 : vector<1xf32> to vector<1x1xf32>
      %cst_23 = arith.constant 0.00148809527 : f32
      %41 = vector.broadcast %cst_23 : f32 to vector<1x1xf32>
      %42 = arith.mulf %31, %41 : vector<1x1xf32>
      %cst_24 = arith.constant 0.00148809527 : f32
      %43 = vector.broadcast %cst_24 : f32 to vector<1x1xf32>
      %44 = arith.mulf %34, %43 : vector<1x1xf32>
      %cst_25 = arith.constant 0.00148809527 : f32
      %45 = vector.broadcast %cst_25 : f32 to vector<1x1xf32>
      %46 = arith.mulf %37, %45 : vector<1x1xf32>
      %47 = arith.mulf %42, %42 : vector<1x1xf32>
      %48 = arith.subf %46, %47 : vector<1x1xf32>
      %cst_26 = arith.constant 0.000000e+00 : f32
      %49 = vector.broadcast %cst_26 : f32 to vector<1x1xf32>
      %50 = arith.maximumf %48, %49 : vector<1x1xf32>
      %cst_27 = arith.constant 0.00148809527 : f32
      %51 = vector.broadcast %cst_27 : f32 to vector<1x1xf32>
      %52 = arith.mulf %40, %51 : vector<1x1xf32>
      %53 = arith.mulf %44, %44 : vector<1x1xf32>
      %54 = arith.subf %52, %53 : vector<1x1xf32>
      %cst_28 = arith.constant 0.000000e+00 : f32
      %55 = vector.broadcast %cst_28 : f32 to vector<1x1xf32>
      %56 = arith.maximumf %54, %55 : vector<1x1xf32>
      %cst_29 = arith.constant 9.99999974E-6 : f32
      %57 = vector.broadcast %cst_29 : f32 to vector<1x1xf32>
      %58 = arith.addf %50, %57 : vector<1x1xf32>
      %59 = math.rsqrt %58 : vector<1x1xf32>
      %cst_30 = arith.constant 9.99999974E-6 : f32
      %60 = vector.broadcast %cst_30 : f32 to vector<1x1xf32>
      %61 = arith.addf %56, %60 : vector<1x1xf32>
      %62 = math.rsqrt %61 : vector<1x1xf32>
      %63 = vector.broadcast %59 : vector<1x1xf32> to vector<1x128xf32>
      %64 = arith.mulf %27, %63 : vector<1x128xf32>
      %65 = vector.broadcast %62 : vector<1x1xf32> to vector<1x128xf32>
      %66 = arith.mulf %28, %65 : vector<1x128xf32>
      %67 = arith.addf %64, %66 : vector<1x128xf32>
      %68 = arith.mulf %42, %59 : vector<1x1xf32>
      %69 = vector.broadcast %68 : vector<1x1xf32> to vector<1x128xf32>
      %70 = arith.mulf %27, %69 : vector<1x128xf32>
      %71 = arith.mulf %44, %62 : vector<1x1xf32>
      %72 = vector.broadcast %71 : vector<1x1xf32> to vector<1x128xf32>
      %73 = arith.mulf %28, %72 : vector<1x128xf32>
      %74 = arith.addf %70, %73 : vector<1x128xf32>
      %75 = arith.subf %24, %74 : vector<1x128xf32>
      %76 = tpu.concatenate %67, %75 in 0 : vector<1x128xf32>, vector<1x128xf32> -> vector<2x128xf32>
      %c0_31 = arith.constant 0 : index
      %c0_32 = arith.constant 0 : index
      %77 = vector.load %arg10[%c0_31, %c0_32] : memref<2x128xf32, #tpu.memory_space<vmem>>, vector<2x128xf32>
      tpu.vector_store %arg10[%c0_31, %c0_32], %76 {strides = array<i32>} : memref<2x128xf32, #tpu.memory_space<vmem>>, vector<2x128xf32>,
    } else {
    }
    %c1_i32_6 = arith.constant 1 : i32
    %13 = arith.cmpi eq, %arg0, %c1_i32_6 : i32
    %14 = arith.extui %13 : i1 to i32
    %c0_i32_7 = arith.constant 0 : i32
    %15 = arith.cmpi ne, %14, %c0_i32_7 : i32
    scf.if %15 {
      %16 = arith.index_cast %arg1 : i32 to index
      %c0 = arith.constant 0 : index
      %c0_8 = arith.constant 0 : index
      %17 = vector.load %arg8[%16, %c0, %c0_8] : memref<2x8x128xf32, #tpu.memory_space<vmem>>, vector<1x8x128xf32>
      %18 = vector.shape_cast %17 : vector<1x8x128xf32> to vector<8x128xf32>
      %c0_9 = arith.constant 0 : index
      %c0_10 = arith.constant 0 : index
      %19 = vector.load %arg10[%c0_9, %c0_10] : memref<2x128xf32, #tpu.memory_space<vmem>>, vector<1x128xf32>
      %20 = vector.broadcast %19 : vector<1x128xf32> to vector<8x128xf32>
      %21 = arith.mulf %18, %20 : vector<8x128xf32>
      %c1 = arith.constant 1 : index
      %c0_11 = arith.constant 0 : index
      %22 = vector.load %arg10[%c1, %c0_11] : memref<2x128xf32, #tpu.memory_space<vmem>>, vector<1x128xf32>
      %23 = vector.broadcast %22 : vector<1x128xf32> to vector<8x128xf32>
      %24 = arith.addf %21, %23 : vector<8x128xf32>
      %cst = arith.constant 0.000000e+00 : f32
      %25 = vector.broadcast %cst : f32 to vector<8x128xf32>
      %26 = arith.maximumf %24, %25 : vector<8x128xf32>
      %c0_12 = arith.constant 0 : index
      %c0_13 = arith.constant 0 : index
      %27 = vector.load %arg4[%c0_12, %c0_13] : memref<128x7xf32, #tpu.memory_space<vmem>>, vector<128x7xf32>
      %cst_14 = arith.constant dense<0.000000e+00> : vector<8x7xf32>
      %28 = tpu.matmul %26, %27, %cst_14 {dimension_numbers = #tpu.dot_dimension_numbers<[1], [0], [0], [1], [0, 0, 1, 1], [], []>} : vector<8x128xf32>, vector<128x7xf32>, vector<8x7xf32> -> vector<8x7xf32>
      %c0_15 = arith.constant 0 : index
      %c0_16 = arith.constant 0 : index
      %29 = vector.load %arg5[%c0_15, %c0_16] : memref<1x7xf32, #tpu.memory_space<vmem>>, vector<1x7xf32>
      %30 = vector.broadcast %29 : vector<1x7xf32> to vector<8x7xf32>
      %31 = arith.addf %28, %30 : vector<8x7xf32>
      %cst_17 = arith.constant dense<0xFF800000> : vector<8xf32>
      %32 = vector.multi_reduction <maximumf>, %31, %cst_17 [1] : vector<8x7xf32> to vector<8xf32>
      %33 = vector.shape_cast %32 : vector<8xf32> to vector<8x1xf32>
      %34 = vector.broadcast %33 : vector<8x1xf32> to vector<8x7xf32>
      %35 = arith.subf %31, %34 : vector<8x7xf32>
      %36 = math.exp %35 : vector<8x7xf32>
      %cst_18 = arith.constant dense<0.000000e+00> : vector<8xf32>
      %37 = vector.multi_reduction <add>, %36, %cst_18 [1] : vector<8x7xf32> to vector<8xf32>
      %38 = vector.shape_cast %37 : vector<8xf32> to vector<8x1xf32>
      %39 = tpu.reciprocal %38 : vector<8x1xf32> -> vector<8x1xf32>
      %40 = vector.broadcast %39 : vector<8x1xf32> to vector<8x7xf32>
      %41 = arith.mulf %36, %40 : vector<8x7xf32>
      %c0_19 = arith.constant 0 : index
      %c0_20 = arith.constant 0 : index
      %42 = vector.load %arg7[%c0_19, %c0_20] : memref<8x7xf32, #tpu.memory_space<vmem>>, vector<8x7xf32>
      tpu.vector_store %arg7[%c0_19, %c0_20], %41 {strides = array<i32>} : memref<8x7xf32, #tpu.memory_space<vmem>>, vector<8x7xf32>,
    } else {
    }
    return
  }
  func.func @transform_0(%arg0: i32, %arg1: i32) -> (i32, i32) {
    %c1_i32 = arith.constant 1 : i32
    %0 = arith.subi %c1_i32, %arg0 : i32
    %1 = arith.muli %0, %arg1 : i32
    %c1_i32_0 = arith.constant 1 : i32
    %2 = arith.muli %arg0, %c1_i32_0 : i32
    %3 = arith.addi %1, %2 : i32
    %c0_i32 = arith.constant 0 : i32
    %c0_i32_1 = arith.constant 0 : i32
    return %3, %c0_i32 : i32, i32
  }
  func.func @transform_1(%arg0: i32, %arg1: i32) -> (i32, i32) {
    %c0_i32 = arith.constant 0 : i32
    %c0_i32_0 = arith.constant 0 : i32
    %c0_i32_1 = arith.constant 0 : i32
    return %c0_i32, %c0_i32_0 : i32, i32
  }
  func.func @transform_2(%arg0: i32, %arg1: i32) -> (i32, i32) {
    %c0_i32 = arith.constant 0 : i32
    %c0_i32_0 = arith.constant 0 : i32
    %c0_i32_1 = arith.constant 0 : i32
    return %c0_i32, %c0_i32_0 : i32, i32
  }
  func.func @transform_3(%arg0: i32, %arg1: i32) -> (i32, i32) {
    %c0_i32 = arith.constant 0 : i32
    %c0_i32_0 = arith.constant 0 : i32
    %c0_i32_1 = arith.constant 0 : i32
    return %c0_i32, %c0_i32_0 : i32, i32
  }
  func.func @transform_4(%arg0: i32, %arg1: i32) -> (i32, i32) {
    %c0_i32 = arith.constant 0 : i32
    %c0_i32_0 = arith.constant 0 : i32
    %c0_i32_1 = arith.constant 0 : i32
    return %c0_i32, %c0_i32_0 : i32, i32
  }
  func.func @transform_5(%arg0: i32, %arg1: i32) -> (i32, i32) {
    %0 = arith.muli %arg0, %arg1 : i32
    %c0_i32 = arith.constant 0 : i32
    %c0_i32_0 = arith.constant 0 : i32
    return %0, %c0_i32 : i32, i32
  }
}

</mosaic_0001>

<llo_original>
// kernel: tpu_custom_call.1
$region0: #{tpu_custom_call.1}
  #allocation0 [shape = 'u32[]', space=smem, size = 0x4, offset = 0x4, fixed_abs, tag = 'smem constant byte address 0x4 - core index']
  #allocation1 [shape = 'u32[144,128]{1,0:T(1,128)}', space=vmem, size = 0x12000, scoped, tag = 'internal scratch']
  #allocation2 [shape = 'f32[2,8,128]{2,1,0:T(8,128)}', space=vmem, size = 0x2000, scoped, tag = 'scratch operand']
  #allocation3 [shape = 'f32[2,8,128]{2,1,0:T(8,128)}', space=vmem, size = 0x2000, scoped, tag = 'scratch operand']
  #allocation4 [shape = 'f32[2,128]{1,0:T(2,128)}', space=vmem, size = 0x400, scoped, tag = 'scratch operand']
  %s0 = inlined_call_operand.vmem [shape: f32[16,336], index: 0, kind: input, shape index: {}]
  %s1 = inlined_call_operand.hbm [shape: f32[336,128], index: 1, kind: input, shape index: {}]
  %s2 = inlined_call_operand.vmem [shape: f32[128,7], index: 2, kind: input, shape index: {}]
  %s3 = inlined_call_operand.vmem [shape: f32[1,7], index: 3, kind: input, shape index: {}]
  %s4 = inlined_call_operand.vmem [shape: f32[6,128], index: 4, kind: input, shape index: {}]
  %s5 = inlined_call_operand.vmem [shape: f32[16,7], index: 5, kind: output, shape index: {}]
  %s6 = sld [smem:[#allocation0]]
  $region73: #{tpu_custom_call.1} parent=0
    _
  %s8 = ssub.s32 1, %s6
  %s9 = scalar_select 0, %s8, %s6
  $region1: #{tpu_custom_call.1} parent=0
    #allocation5 [shape = 'u8[172032]{0}', space=vmem, size = 0x2a000, scoped, tag = 'input window, operand 1, single buffered']
    #allocation6 [shape = 's32[2]{0}', space=sflag, size = 0x8, scoped, tag = 'scoped memory for tpu_custom_call.1']
    %10 = vsyncpa [#allocation6], 0
    loop: start=0, step=1, limit=6
    $region2: #{tpu_custom_call.1} parent=1 // loop_pre_header
      _
    $region3: #{tpu_custom_call.1} parent=1 // loop_header
      %s12 = sphi 0, %s16
      %p13 = scmp.ge.s32.totalorder %s12, 6
      %s19 = sphi 0, %s31
      %s20 = sphi 0, %s27
      %s21 = sphi 0, %s19
      %s22 = sphi 0, %s20
      %s23 = sphi 0, %s21
      %s24 = sphi 0, %s22
      %s40 = sphi 0, %s42
      %s43 = sphi 0, %s40
      %s44 = sphi 0, %s43
      %s60 = sphi 0, %s44
      %s64 = sphi 0, %s64
      %s66 = sphi 0, %s64
      %s67 = sphi 0, %s66
      %s81 = sphi 0, %s67
      %s85 = sphi 0, %s85
      %s87 = sphi 0, %s85
      %s88 = sphi 0, %s87
      %s102 = sphi 0, %s88
      %s106 = sphi 0, %s106
      %s108 = sphi 0, %s106
      %s109 = sphi 0, %s108
      %s123 = sphi 0, %s109
      %s127 = sphi 0, %s127
      %s129 = sphi 0, %s127
      %s130 = sphi 0, %s129
      %s144 = sphi 0, %s130
      %s152 = sphi 0, %s154
      %s155 = sphi 0, %s152
      %s156 = sphi 0, %s155
      %s172 = sphi 0, %s156
    $region4: #{tpu_custom_call.1} parent=1 // loop_header_branch
      %15 = sbr.rel (%p13) target = $region8
    $region5: #{tpu_custom_call.1} parent=1 // loop_body
      %s17 = ssub.s32 %s12, 1
      %s18 = ssub.s32 %s12, 2
      %s25 = sadd.s32 1, %s20
      %p26 = scmp.ge.s32.totalorder %s25, 2
      %s27 = scalar_select %p26, 0, %s25
      %s28 = sadd.s32 1, %s19
      %s29 = scalar_select %p26, %s28, %s19
      %p30 = scmp.ge.s32.totalorder %s29, 2
      %s31 = scalar_select %p30, 0, %s29
      %s32 = ssub.s32 1, %s19
      %s33 = smul.u32 %s32, %s20
      %s34 = sadd.s32 %s33, %s19
      %s35 = ssub.s32 1, %s31
      %s36 = smul.u32 %s35, %s27
      %s37 = sadd.s32 %s36, %s31
      %s38 = ssub.s32 %s34, %s37
      %p39 = scmp.eq.s32.totalorder %s38, 0
      %s41 = sadd.s32 %s40, 1
      %s42 = scalar_select %p39, %s40, %s41
      %p45 = pneg %p39
      %p46 = scmp.eq.s32.totalorder %s12, 3
      %p47 = por %p45, %p46
      %p48 = scmp.ne.s32.totalorder %s40, %s43
      %p49 = scmp.eq.s32.totalorder %s12, 0
      %p50 = por %p48, %p49
      %p51 = scmp.ne.s32.totalorder %s40, %s43
      %p52 = scmp.eq.s32.totalorder %s17, 3
      %p53 = por %p51, %p52
      %p54 = scmp.ne.s32.totalorder %s43, %s44
      %p55 = scmp.eq.s32.totalorder %s17, 0
      %p56 = por %p54, %p55
      %p57 = scmp.ne.s32.totalorder %s43, %s44
      %p58 = scmp.eq.s32.totalorder %s18, 3
      %p59 = por %p57, %p58
      %p61 = scmp.ne.s32.totalorder %s44, %s60
      %p62 = scmp.eq.s32.totalorder %s18, 0
      %p63 = por %p61, %p62
      %s65 = sadd.s32 %s64, 1
      %p68 = scmp.eq.s32.totalorder %s12, 3
      %p69 = scmp.ne.s32.totalorder %s64, %s66
      %p70 = scmp.eq.s32.totalorder %s12, 0
      %p71 = por %p69, %p70
      %p72 = scmp.ne.s32.totalorder %s64, %s66
      %p73 = scmp.eq.s32.totalorder %s17, 3
      %p74 = por %p72, %p73
      %p75 = scmp.ne.s32.totalorder %s66, %s67
      %p76 = scmp.eq.s32.totalorder %s17, 0
      %p77 = por %p75, %p76
      %p78 = scmp.ne.s32.totalorder %s66, %s67
      %p79 = scmp.eq.s32.totalorder %s18, 3
      %p80 = por %p78, %p79
      %p82 = scmp.ne.s32.totalorder %s67, %s81
      %p83 = scmp.eq.s32.totalorder %s18, 0
      %p84 = por %p82, %p83
      %s86 = sadd.s32 %s85, 1
      %p89 = scmp.eq.s32.totalorder %s12, 3
      %p90 = scmp.ne.s32.totalorder %s85, %s87
      %p91 = scmp.eq.s32.totalorder %s12, 0
      %p92 = por %p90, %p91
      %p93 = scmp.ne.s32.totalorder %s85, %s87
      %p94 = scmp.eq.s32.totalorder %s17, 3
      %p95 = por %p93, %p94
      %p96 = scmp.ne.s32.totalorder %s87, %s88
      %p97 = scmp.eq.s32.totalorder %s17, 0
      %p98 = por %p96, %p97
      %p99 = scmp.ne.s32.totalorder %s87, %s88
      %p100 = scmp.eq.s32.totalorder %s18, 3
      %p101 = por %p99, %p100
      %p103 = scmp.ne.s32.totalorder %s88, %s102
      %p104 = scmp.eq.s32.totalorder %s18, 0
      %p105 = por %p103, %p104
      %s107 = sadd.s32 %s106, 1
      %p110 = scmp.eq.s32.totalorder %s12, 3
      %p111 = scmp.ne.s32.totalorder %s106, %s108
      %p112 = scmp.eq.s32.totalorder %s12, 0
      %p113 = por %p111, %p112
      %p114 = scmp.ne.s32.totalorder %s106, %s108
      %p115 = scmp.eq.s32.totalorder %s17, 3
      %p116 = por %p114, %p115
      %p117 = scmp.ne.s32.totalorder %s108, %s109
      %p118 = scmp.eq.s32.totalorder %s17, 0
      %p119 = por %p117, %p118
      %p120 = scmp.ne.s32.totalorder %s108, %s109
      %p121 = scmp.eq.s32.totalorder %s18, 3
      %p122 = por %p120, %p121
      %p124 = scmp.ne.s32.totalorder %s109, %s123
      %p125 = scmp.eq.s32.totalorder %s18, 0
      %p126 = por %p124, %p125
      %s128 = sadd.s32 %s127, 1
      %p131 = scmp.eq.s32.totalorder %s12, 3
      %p132 = scmp.ne.s32.totalorder %s127, %s129
      %p133 = scmp.eq.s32.totalorder %s12, 0
      %p134 = por %p132, %p133
      %p135 = scmp.ne.s32.totalorder %s127, %s129
      %p136 = scmp.eq.s32.totalorder %s17, 3
      %p137 = por %p135, %p136
      %p138 = scmp.ne.s32.totalorder %s129, %s130
      %p139 = scmp.eq.s32.totalorder %s17, 0
      %p140 = por %p138, %p139
      %p141 = scmp.ne.s32.totalorder %s129, %s130
      %p142 = scmp.eq.s32.totalorder %s18, 3
      %p143 = por %p141, %p142
      %p145 = scmp.ne.s32.totalorder %s130, %s144
      %p146 = scmp.eq.s32.totalorder %s18, 0
      %p147 = por %p145, %p146
      %s148 = smul.u32 %s19, %s20
      %s149 = smul.u32 %s31, %s27
      %s150 = ssub.s32 %s148, %s149
      %p151 = scmp.eq.s32.totalorder %s150, 0
      %s153 = sadd.s32 %s152, 1
      %s154 = scalar_select %p151, %s152, %s153
      %p157 = pneg %p151
      %p158 = scmp.eq.s32.totalorder %s12, 3
      %p159 = por %p157, %p158
      %p160 = scmp.ne.s32.totalorder %s152, %s155
      %p161 = scmp.eq.s32.totalorder %s12, 0
      %p162 = por %p160, %p161
      %p163 = scmp.ne.s32.totalorder %s152, %s155
      %p164 = scmp.eq.s32.totalorder %s17, 3
      %p165 = por %p163, %p164
      %p166 = scmp.ne.s32.totalorder %s155, %s156
      %p167 = scmp.eq.s32.totalorder %s17, 0
      %p168 = por %p166, %p167
      %p169 = scmp.ne.s32.totalorder %s155, %s156
      %p170 = scmp.eq.s32.totalorder %s18, 3
      %p171 = por %p169, %p170
      %p173 = scmp.ne.s32.totalorder %s156, %s172
      %p174 = scmp.eq.s32.totalorder %s18, 0
      %p175 = por %p173, %p174
      %p176 = scmp.le.s32.totalorder 1, %s12
      %p177 = scmp.lt.s32.totalorder %s12, 5
      %p178 = pnand %p176, %p177
      %p179 = pneg %p178
      // Predicated region
      $region9: #{tpu_custom_call.1} parent=5 // pred_check
        _
      $region10: #{tpu_custom_call.1} parent=5 // pred_check_branch
        %181 = sbr.rel (%p178) target = $region12
      $region11: #{tpu_custom_call.1} parent=5 // pred_region
        %s182 = ssub.s32 %s12, 1
        // Predicated region
        $region13: #{tpu_custom_call.1} parent=11 // pred_check
          %p183 = pneg %p77
        $region14: #{tpu_custom_call.1} parent=11 // pred_check_branch
          %185 = sbr.rel (%p183) target = $region16
        $region15: #{tpu_custom_call.1} parent=11 // pred_region
          %s187 = ssub.s32 5376, 5376
          %188 = vsyncadd [#allocation6], %s187
          %s189 = sshll.u32 [#allocation5], 4
          %s190 = int_to_ptr.vmem [resolvable:$true] %s189
          %195 = dma.hbm_to_vmem [thread:$0]  %s1, 5376, %s190, [#allocation6], 128, 128, 8
        $region16: #{tpu_custom_call.1} parent=11 // pred_fallthru
          _
        // Predicated region
        $region17: #{tpu_custom_call.1} parent=11 // pred_check
          %p196 = pneg %p98
        $region18: #{tpu_custom_call.1} parent=11 // pred_check_branch
          %198 = sbr.rel (%p196) target = $region20
        $region19: #{tpu_custom_call.1} parent=11 // pred_region
          _
        $region20: #{tpu_custom_call.1} parent=11 // pred_fallthru
          _
        // Predicated region
        $region21: #{tpu_custom_call.1} parent=11 // pred_check
          %p199 = pneg %p119
        $region22: #{tpu_custom_call.1} parent=11 // pred_check_branch
          %201 = sbr.rel (%p199) target = $region24
        $region23: #{tpu_custom_call.1} parent=11 // pred_region
          _
        $region24: #{tpu_custom_call.1} parent=11 // pred_fallthru
          _
        // Predicated region
        $region25: #{tpu_custom_call.1} parent=11 // pred_check
          %p202 = pneg %p140
        $region26: #{tpu_custom_call.1} parent=11 // pred_check_branch
          %204 = sbr.rel (%p202) target = $region28
        $region27: #{tpu_custom_call.1} parent=11 // pred_region
          _
        $region28: #{tpu_custom_call.1} parent=11 // pred_fallthru
          _
      $region12: #{tpu_custom_call.1} parent=5 // pred_fallthru
        _
      %p205 = scmp.lt.s32.totalorder %s12, 4
      // Predicated region
      $region29: #{tpu_custom_call.1} parent=5 // pred_check
        %p206 = pneg %p205
      $region30: #{tpu_custom_call.1} parent=5 // pred_check_branch
        %208 = sbr.rel (%p206) target = $region32
      $region31: #{tpu_custom_call.1} parent=5 // pred_region
        // Predicated region
        $region33: #{tpu_custom_call.1} parent=31 // pred_check
          %p209 = pneg %p50
        $region34: #{tpu_custom_call.1} parent=31 // pred_check_branch
          %211 = sbr.rel (%p209) target = $region36
        $region35: #{tpu_custom_call.1} parent=31 // pred_region
          %s212 = ssub.s32 1, %s19
          %s213 = smul.u32 %s212, %s20
          %s214 = sadd.s32 %s213, %s19
          %p215 = scmp.lt.s32.totalorder %s214, 1
          %s216 = scalar_select %p215, %s214, 1
          %s217 = smul.addr %s216, 3
          %s218 = smul.addr %s217, 8
          %s219 = scalar_lea.vmem %s0, %s218
          %s220 = ssub.s32 1, %s19
          %s221 = smul.u32 %s220, %s20
          %s222 = sadd.s32 %s221, %s19
        $region36: #{tpu_custom_call.1} parent=31 // pred_fallthru
          _
      $region32: #{tpu_custom_call.1} parent=5 // pred_fallthru
        _
      %p223 = scmp.le.s32.totalorder 1, %s12
      %p224 = scmp.lt.s32.totalorder %s12, 5
      %p225 = pnand %p223, %p224
      %p226 = pneg %p225
      // Predicated region
      $region37: #{tpu_custom_call.1} parent=5 // pred_check
        _
      $region38: #{tpu_custom_call.1} parent=5 // pred_check_branch
        %228 = sbr.rel (%p225) target = $region40
      $region39: #{tpu_custom_call.1} parent=5 // pred_region
        %s229 = ssub.s32 %s12, 1
        // Predicated region
        $region41: #{tpu_custom_call.1} parent=39 // pred_check
          %p230 = pneg %p77
        $region42: #{tpu_custom_call.1} parent=39 // pred_check_branch
          %232 = sbr.rel (%p230) target = $region44
        $region43: #{tpu_custom_call.1} parent=39 // pred_region
          %233 = dma.done [#allocation6], 5376
        $region44: #{tpu_custom_call.1} parent=39 // pred_fallthru
          _
        %s234 = ssub.s32 1, %s21
        %s235 = smul.u32 %s234, %s22
        %s236 = sadd.s32 %s235, %s21
        %p237 = scmp.lt.s32.totalorder %s236, 1
        %s238 = scalar_select %p237, %s236, 1
        %s239 = smul.addr %s238, 3
        %s240 = smul.addr %s239, 8
        %s241 = scalar_lea.vmem %s0, %s240
        %p242 = pneg %p56
        %p243 = pneg %p53
        %p244 = pneg %p77
        %p245 = pneg %p74
        %p246 = pneg %p98
        %p247 = pneg %p95
        %p248 = pneg %p119
        %p249 = pneg %p116
        %p250 = pneg %p140
        %p251 = pneg %p137
        %p252 = pneg %p168
        %p253 = pneg %p165
        %s254 = smul.u32 %s21, %s22
        %p255 = scmp.lt.s32.totalorder %s254, 1
        %s256 = scalar_select %p255, %s254, 1
        %s257 = smul.addr %s256, 8
        %s258 = scalar_lea.vmem %s5, %s257
        %s259 = ssub.s32 1, %s21
        %s260 = smul.u32 %s259, %s22
        %s261 = sadd.s32 %s260, %s21
        %p262 = scmp.lt.s32.totalorder %s261, 1
        %s263 = scalar_select %p262, %s261, 1
        %s264 = smul.addr %s263, 3
        %s265 = smul.addr %s264, 8
        %s266 = scalar_lea.vmem %s0, %s265
        %s267 = ssub.s32 1, %s21
        %s268 = smul.u32 %s267, %s22
        %s269 = sadd.s32 %s268, %s21
        %s270 = smul.u32 %s21, %s22
        %p271 = scmp.lt.s32.totalorder %s270, 1
        %s272 = scalar_select %p271, %s270, 1
        %s273 = smul.addr %s272, 8
        %s274 = scalar_lea.vmem %s5, %s273
        %s275 = smul.u32 %s21, %s22
        %p276 = scmp.eq.s32.totalorder %s21, 0
        %p277 = scmp.eq.s32.totalorder %s22, 0
        %p278 = pnand %p276, %p277
        %p279 = pneg %p278
        // Predicated region
        $region45: #{tpu_custom_call.1} parent=39 // pred_check
          _
        $region46: #{tpu_custom_call.1} parent=39 // pred_check_branch
          %281 = sbr.rel (%p278) target = $region48
        $region47: #{tpu_custom_call.1} parent=39 // pred_region
          %282 = vst [vmem:[#allocation3] sm:$0xff] 0.0
          %283 = vst [vmem:[#allocation3 + $0x8] sm:$0xff] 0.0
        $region48: #{tpu_custom_call.1} parent=39 // pred_fallthru
          _
        // Predicated region
        $region49: #{tpu_custom_call.1} parent=39 // pred_check
          %p284 = pneg %p276
        $region50: #{tpu_custom_call.1} parent=39 // pred_check_branch
          %286 = sbr.rel (%p284) target = $region52
        $region51: #{tpu_custom_call.1} parent=39 // pred_region
          %v287 = vld [vmem:[%s266] sm:$0xff]
          %v288 = vld [vmem:[%s266 + $0x8] sm:$0xff]
          %v289 = vld [vmem:[%s266 + $0x10] sm:$0xff]
          %v290 = vld [vmem:[#allocation5] sm:$0xff]
          %v291 = vld [vmem:[#allocation5 + $0x8] sm:$0xff]
          %v292 = vld [vmem:[#allocation5 + $0x10] sm:$0xff]
          %v293 = vld [vmem:[#allocation5 + $0x18] sm:$0xff]
          %v294 = vld [vmem:[#allocation5 + $0x20] sm:$0xff]
          %v295 = vld [vmem:[#allocation5 + $0x28] sm:$0xff]
          %v296 = vld [vmem:[#allocation5 + $0x30] sm:$0xff]
          %v297 = vld [vmem:[#allocation5 + $0x38] sm:$0xff]
          %v298 = vld [vmem:[#allocation5 + $0x40] sm:$0xff]
          %v299 = vld [vmem:[#allocation5 + $0x48] sm:$0xff]
          %v300 = vld [vmem:[#allocation5 + $0x50] sm:$0xff]
          %v301 = vld [vmem:[#allocation5 + $0x58] sm:$0xff]
          %v302 = vld [vmem:[#allocation5 + $0x60] sm:$0xff]
          %v303 = vld [vmem:[#allocation5 + $0x68] sm:$0xff]
          %v304 = vld [vmem:[#allocation5 + $0x70] sm:$0xff]
          %v305 = vld [vmem:[#allocation5 + $0x78] sm:$0xff]
          %v306 = vld [vmem:[#allocation5 + $0x80] sm:$0xff]
          %v307 = vld [vmem:[#allocation5 + $0x88] sm:$0xff]
          %v308 = vld [vmem:[#allocation5 + $0x90] sm:$0xff]
          %v309 = vld [vmem:[#allocation5 + $0x98] sm:$0xff]
          %v310 = vld [vmem:[#allocation5 + $0xa0] sm:$0xff]
          %v311 = vld [vmem:[#allocation5 + $0xa8] sm:$0xff]
          %v312 = vld [vmem:[#allocation5 + $0xb0] sm:$0xff]
          %v313 = vld [vmem:[#allocation5 + $0xb8] sm:$0xff]
          %v314 = vld [vmem:[#allocation5 + $0xc0] sm:$0xff]
          %v315 = vld [vmem:[#allocation5 + $0xc8] sm:$0xff]
          %v316 = vld [vmem:[#allocation5 + $0xd0] sm:$0xff]
          %v317 = vld [vmem:[#allocation5 + $0xd8] sm:$0xff]
          %v318 = vld [vmem:[#allocation5 + $0xe0] sm:$0xff]
          %v319 = vld [vmem:[#allocation5 + $0xe8] sm:$0xff]
          %v320 = vld [vmem:[#allocation5 + $0xf0] sm:$0xff]
          %v321 = vld [vmem:[#allocation5 + $0xf8] sm:$0xff]
          %v322 = vld [vmem:[#allocation5 + $0x100] sm:$0xff]
          %v323 = vld [vmem:[#allocation5 + $0x108] sm:$0xff]
          %v324 = vld [vmem:[#allocation5 + $0x110] sm:$0xff]
          %v325 = vld [vmem:[#allocation5 + $0x118] sm:$0xff]
          %v326 = vld [vmem:[#allocation5 + $0x120] sm:$0xff]
          %v327 = vld [vmem:[#allocation5 + $0x128] sm:$0xff]
          %v328 = vld [vmem:[#allocation5 + $0x130] sm:$0xff]
          %v329 = vld [vmem:[#allocation5 + $0x138] sm:$0xff]
          %v330 = vld [vmem:[#allocation5 + $0x140] sm:$0xff]
          %v331 = vld [vmem:[#allocation5 + $0x148] sm:$0xff]
          %v332 = vld [vmem:[%s4] sm:$0x1]
          %v333 = vlaneseq
          %v334 = vshrl.u32 %v333, 7
          %v335 = vsub.s32 0, %v334
          %v336 = vrot.slane %v332, %v335
          %vm337 = vcmask 654336
          %v339 = vsel %vm337, %v289, 0
          %341 = vmatprep.subr.mxu0 0.0
          %342 = vmatpush1.msra.mxu0 %v305
          %343 = vmatprep.subr.mxu0 0.0
          %344 = vmatpush1.msra.mxu0 %v304
          %345 = vmatprep.subr.mxu0 0.0
          %346 = vmatpush1.msra.mxu0 %v303
          %347 = vmatprep.subr.mxu0 0.0
          %348 = vmatpush1.msra.mxu0 %v302
          %349 = vmatprep.subr.mxu0 0.0
          %350 = vmatpush1.msra.mxu0 %v301
          %351 = vmatprep.subr.mxu0 0.0
          %352 = vmatpush1.msra.mxu0 %v300
          %353 = vmatprep.subr.mxu0 0.0
          %354 = vmatpush1.msra.mxu0 %v299
          %355 = vmatprep.subr.mxu0 0.0
          %356 = vmatpush1.msra.mxu0 %v298
          %357 = vmatprep.subr.mxu0 0.0
          %358 = vmatpush1.msra.mxu0 %v297
          %359 = vmatprep.subr.mxu0 0.0
          %360 = vmatpush1.msra.mxu0 %v296
          %361 = vmatprep.subr.mxu0 0.0
          %362 = vmatpush1.msra.mxu0 %v295
          %363 = vmatprep.subr.mxu0 0.0
          %364 = vmatpush1.msra.mxu0 %v294
          %365 = vmatprep.subr.mxu0 0.0
          %366 = vmatpush1.msra.mxu0 %v293
          %367 = vmatprep.subr.mxu0 0.0
          %368 = vmatpush1.msra.mxu0 %v292
          %369 = vmatprep.subr.mxu0 0.0
          %370 = vmatpush1.msra.mxu0 %v291
          %371 = vmatprep.subr.mxu0 0.0
          %372 = vmatpush1.msra.mxu0 %v290
          %373 = vmatprep.subr.mxu0 0.0
          %374 = vmatpush2.msra.mxu0 %v321
          %375 = vmatprep.subr.mxu0 0.0
          %376 = vmatpush2.msra.mxu0 %v320
          %377 = vmatprep.subr.mxu0 0.0
          %378 = vmatpush2.msra.mxu0 %v319
          %379 = vmatprep.subr.mxu0 0.0
          %380 = vmatpush2.msra.mxu0 %v318
          %381 = vmatprep.subr.mxu0 0.0
          %382 = vmatpush2.msra.mxu0 %v317
          %383 = vmatprep.subr.mxu0 0.0
          %384 = vmatpush2.msra.mxu0 %v316
          %385 = vmatprep.subr.mxu0 0.0
          %386 = vmatpush2.msra.mxu0 %v315
          %387 = vmatprep.subr.mxu0 0.0
          %388 = vmatpush2.msra.mxu0 %v314
          %389 = vmatprep.subr.mxu0 0.0
          %390 = vmatpush2.msra.mxu0 %v313
          %391 = vmatprep.subr.mxu0 0.0
          %392 = vmatpush2.msra.mxu0 %v312
          %393 = vmatprep.subr.mxu0 0.0
          %394 = vmatpush2.msra.mxu0 %v311
          %395 = vmatprep.subr.mxu0 0.0
          %396 = vmatpush2.msra.mxu0 %v310
          %397 = vmatprep.subr.mxu0 0.0
          %398 = vmatpush2.msra.mxu0 %v309
          %399 = vmatprep.subr.mxu0 0.0
          %400 = vmatpush2.msra.mxu0 %v308
          %401 = vmatprep.subr.mxu0 0.0
          %402 = vmatpush2.msra.mxu0 %v307
          %403 = vmatprep.subr.mxu0 0.0
          %404 = vmatpush2.msra.mxu0 %v306
          %405 = vmatprep.mubr.f32.mxu0 %v288
          %406 = vmatmul.mubr.f32.gmra.mxu0 %v287
          %v407 = vpop.f32.mrf.mxu0
          %v408 = vadd.f32 %v336, %v407
          %v409 = vpop.f32.mrf.mxu0
          %410 = vdwg.mxu0
          %411 = vmatprep.subr.mxu0 0.0
          %412 = vmatpush1.msra.mxu0 0.0
          %413 = vmatprep.subr.mxu0 0.0
          %414 = vmatpush1.msra.mxu0 0.0
          %415 = vmatprep.subr.mxu0 0.0
          %416 = vmatpush1.msra.mxu0 0.0
          %417 = vmatprep.subr.mxu0 0.0
          %418 = vmatpush1.msra.mxu0 0.0
          %419 = vmatprep.subr.mxu0 0.0
          %420 = vmatpush1.msra.mxu0 0.0
          %421 = vmatprep.subr.mxu0 0.0
          %422 = vmatpush1.msra.mxu0 0.0
          %423 = vmatprep.subr.mxu0 0.0
          %424 = vmatpush1.msra.mxu0 %v331
          %425 = vmatprep.subr.mxu0 0.0
          %426 = vmatpush1.msra.mxu0 %v330
          %427 = vmatprep.subr.mxu0 0.0
          %428 = vmatpush1.msra.mxu0 %v329
          %429 = vmatprep.subr.mxu0 0.0
          %430 = vmatpush1.msra.mxu0 %v328
          %431 = vmatprep.subr.mxu0 0.0
          %432 = vmatpush1.msra.mxu0 %v327
          %433 = vmatprep.subr.mxu0 0.0
          %434 = vmatpush1.msra.mxu0 %v326
          %435 = vmatprep.subr.mxu0 0.0
          %436 = vmatpush1.msra.mxu0 %v325
          %437 = vmatprep.subr.mxu0 0.0
          %438 = vmatpush1.msra.mxu0 %v324
          %439 = vmatprep.subr.mxu0 0.0
          %440 = vmatpush1.msra.mxu0 %v323
          %441 = vmatprep.subr.mxu0 0.0
          %442 = vmatpush1.msra.mxu0 %v322
          %443 = vmatprep.subr.mxu0 0.0
          %444 = vmatpush2.msra.mxu0 0.0
          %445 = vmatprep.subr.mxu0 0.0
          %446 = vmatpush2.msra.mxu0 0.0
          %447 = vmatprep.subr.mxu0 0.0
          %448 = vmatpush2.msra.mxu0 0.0
          %449 = vmatprep.subr.mxu0 0.0
          %450 = vmatpush2.msra.mxu0 0.0
          %451 = vmatprep.subr.mxu0 0.0
          %452 = vmatpush2.msra.mxu0 0.0
          %453 = vmatprep.subr.mxu0 0.0
          %454 = vmatpush2.msra.mxu0 0.0
          %455 = vmatprep.subr.mxu0 0.0
          %456 = vmatpush2.msra.mxu0 0.0
          %457 = vmatprep.subr.mxu0 0.0
          %458 = vmatpush2.msra.mxu0 0.0
          %459 = vmatprep.subr.mxu0 0.0
          %460 = vmatpush2.msra.mxu0 0.0
          %461 = vmatprep.subr.mxu0 0.0
          %462 = vmatpush2.msra.mxu0 0.0
          %463 = vmatprep.subr.mxu0 0.0
          %464 = vmatpush2.msra.mxu0 0.0
          %465 = vmatprep.subr.mxu0 0.0
          %466 = vmatpush2.msra.mxu0 0.0
          %467 = vmatprep.subr.mxu0 0.0
          %468 = vmatpush2.msra.mxu0 0.0
          %469 = vmatprep.subr.mxu0 0.0
          %470 = vmatpush2.msra.mxu0 0.0
          %471 = vmatprep.subr.mxu0 0.0
          %472 = vmatpush2.msra.mxu0 0.0
          %473 = vmatprep.subr.mxu0 0.0
          %474 = vmatpush2.msra.mxu0 0.0
          %475 = vmatprep.mubr.f32.mxu0 0.0
          %476 = vmatmul.mubr.f32.gmra.mxu0 %v339
          %v477 = vpop.f32.mrf.mxu0
          %v478 = vadd.f32 %v408, %v477
          %v479 = vpop.f32.mrf.mxu0
          %480 = vdwg.mxu0
          %s481 = smul.u32 %s22, 8
          %s482 = scalar_lea.vmem [#allocation2], %s481
          %483 = vst [vmem:[%s482] sm:$0xff] %v478
          %v484 = vld [vmem:[#allocation3] sm:$0xff]
          %v485 = vadd.f32 %v478, 0.0
          %v486 = vadd.f32 %v484, %v485
          %487 = vst [vmem:[#allocation3] sm:$0xff] %v486
          %s488 = scalar_lea.vmem [#allocation3], 8
          %v489 = vld [vmem:[%s488] sm:$0xff]
          %v490 = vmul.f32 %v478, %v478
          %v491 = vadd.f32 %v490, 0.0
          %v492 = vadd.f32 %v489, %v491
          %493 = vst [vmem:[%s488] sm:$0xff] %v492
        $region52: #{tpu_custom_call.1} parent=39 // pred_fallthru
          _
        %p494 = scmp.eq.s32.totalorder %s21, 1
        %p495 = pnand %p494, %p277
        %p496 = pneg %p495
        // Predicated region
        $region53: #{tpu_custom_call.1} parent=39 // pred_check
          _
        $region54: #{tpu_custom_call.1} parent=39 // pred_check_branch
          %498 = sbr.rel (%p495) target = $region56
        $region55: #{tpu_custom_call.1} parent=39 // pred_region
          %v499 = vld [vmem:[#allocation3] sm:$0xff]
          %v500 = vrot.slane %v499, 4
          %v501 = vadd.f32 %v499, %v500
          %v502 = vrot.slane %v501, 2
          %v503 = vadd.f32 %v501, %v502
          %v504 = vrot.slane %v503, 1
          %v505 = vadd.f32 %v503, %v504
          %s506 = scalar_lea.vmem [#allocation3], 8
          %v507 = vld [vmem:[%s506] sm:$0xff]
          %v508 = vrot.slane %v507, 4
          %v509 = vadd.f32 %v507, %v508
          %v510 = vrot.slane %v509, 2
          %v511 = vadd.f32 %v509, %v510
          %v512 = vrot.slane %v511, 1
          %v513 = vadd.f32 %v511, %v512
          %v514 = vld [vmem:[%s4 + $0x1] sm:$0x1]
          %v515 = vld [vmem:[%s4 + $0x2] sm:$0x1]
          %v516 = vld [vmem:[%s4 + $0x3] sm:$0x1]
          %v517 = vld [vmem:[%s4 + $0x4] sm:$0x1]
          %v518 = vld [vmem:[%s4 + $0x5] sm:$0x1]
          %v519 = vmul.f32 %v505, %v515
          %vm520 = vcmask 1040384
          %v521 = vsel %vm520, %v519, 0.0
          %522 = vadd.xlane.f32.xlu0 %v521
          %v523 = vpop.xlane.xlu0 %522
          %v524 = vmul.f32 %v505, %v516
          %v525 = vsel %vm520, %v524, 0.0
          %526 = vadd.xlane.f32.xlu0 %v525
          %v527 = vpop.xlane.xlu0 %526
          %v528 = vmul.f32 %v513, %v515
          %v529 = vsel %vm520, %v528, 0.0
          %530 = vadd.xlane.f32.xlu0 %v529
          %v531 = vpop.xlane.xlu0 %530
          %v532 = vmul.f32 %v513, %v516
          %v533 = vsel %vm520, %v532, 0.0
          %534 = vadd.xlane.f32.xlu0 %v533
          %v535 = vpop.xlane.xlu0 %534
          %v536 = vmul.f32 %v523, 0.0014880953
          %v537 = vmul.f32 %v527, 0.0014880953
          %v538 = vmul.f32 %v531, 0.0014880953
          %v539 = vmul.f32 %v536, %v536
          %v540 = vsub.f32 %v538, %v539
          %v541 = vmax.f32 %v540, 0.0
          %v542 = vmul.f32 %v535, 0.0014880953
          %v543 = vmul.f32 %v537, %v537
          %v544 = vsub.f32 %v542, %v543
          %v545 = vmax.f32 %v544, 0.0
          %v546 = vadd.f32 %v541, 1e-05
          %v547 = vrsqrt.pop %v546
          %v548 = vadd.f32 %v545, 1e-05
          %v549 = vrsqrt.pop %v548
          %v550 = vmul.f32 %v517, %v547
          %v551 = vmul.f32 %v518, %v549
          %v552 = vadd.f32 %v550, %v551
          %v553 = vmul.f32 %v536, %v547
          %v554 = vmul.f32 %v517, %v553
          %v555 = vmul.f32 %v537, %v549
          %v556 = vmul.f32 %v518, %v555
          %v557 = vadd.f32 %v554, %v556
          %v558 = vsub.f32 %v514, %v557
          %v560 = vrot.slane %v558, 7
          %v562 = vsel %vm520, %v552, %v560
          %563 = vst [vmem:[#allocation4] sm:$0x3] %v562
        $region56: #{tpu_custom_call.1} parent=39 // pred_fallthru
          _
        // Predicated region
        $region57: #{tpu_custom_call.1} parent=39 // pred_check
          %p564 = pneg %p494
        $region58: #{tpu_custom_call.1} parent=39 // pred_check_branch
          %566 = sbr.rel (%p564) target = $region60
        $region59: #{tpu_custom_call.1} parent=39 // pred_region
          %s567 = smul.u32 %s22, 8
          %s568 = scalar_lea.vmem [#allocation2], %s567
          %v569 = vld [vmem:[%s568] sm:$0xff]
          %v570 = vld [vmem:[#allocation4] sm:$0x1]
          %v571 = vlaneseq
          %v572 = vshrl.u32 %v571, 7
          %v573 = vsub.s32 0, %v572
          %v574 = vrot.slane %v570, %v573
          %v575 = vmul.f32 %v569, %v574
          %v576 = vld [vmem:[#allocation4 + $0x1] sm:$0x1]
          %v577 = vlaneseq
          %v578 = vshrl.u32 %v577, 7
          %v579 = vsub.s32 0, %v578
          %v580 = vrot.slane %v576, %v579
          %v581 = vadd.f32 %v575, %v580
          %v582 = vmax.f32 %v581, 0.0
          %v583 = vld [vmem:[%s2] sm:$0xff]
          %v584 = vld [vmem:[%s2 + $0x8] sm:$0xff]
          %v585 = vld [vmem:[%s2 + $0x10] sm:$0xff]
          %v586 = vld [vmem:[%s2 + $0x18] sm:$0xff]
          %v587 = vld [vmem:[%s2 + $0x20] sm:$0xff]
          %v588 = vld [vmem:[%s2 + $0x28] sm:$0xff]
          %v589 = vld [vmem:[%s2 + $0x30] sm:$0xff]
          %v590 = vld [vmem:[%s2 + $0x38] sm:$0xff]
          %v591 = vld [vmem:[%s2 + $0x40] sm:$0xff]
          %v592 = vld [vmem:[%s2 + $0x48] sm:$0xff]
          %v593 = vld [vmem:[%s2 + $0x50] sm:$0xff]
          %v594 = vld [vmem:[%s2 + $0x58] sm:$0xff]
          %v595 = vld [vmem:[%s2 + $0x60] sm:$0xff]
          %v596 = vld [vmem:[%s2 + $0x68] sm:$0xff]
          %v597 = vld [vmem:[%s2 + $0x70] sm:$0xff]
          %v598 = vld [vmem:[%s2 + $0x78] sm:$0xff]
          %v599 = vld [vmem:[%s3] sm:$0x1]
          %v601 = vlaneseq
          %v602 = vshrl.u32 %v601, 7
          %v603 = vsub.s32 0, %v602
          %v604 = vrot.slane %v599, %v603
          %606 = vmatprep.subr.mxu0 0.0
          %607 = vmatpush1.msra.mxu0 %v598
          %608 = vmatprep.subr.mxu0 0.0
          %609 = vmatpush1.msra.mxu0 %v597
          %610 = vmatprep.subr.mxu0 0.0
          %611 = vmatpush1.msra.mxu0 %v596
          %612 = vmatprep.subr.mxu0 0.0
          %613 = vmatpush1.msra.mxu0 %v595
          %614 = vmatprep.subr.mxu0 0.0
          %615 = vmatpush1.msra.mxu0 %v594
          %616 = vmatprep.subr.mxu0 0.0
          %617 = vmatpush1.msra.mxu0 %v593
          %618 = vmatprep.subr.mxu0 0.0
          %619 = vmatpush1.msra.mxu0 %v592
          %620 = vmatprep.subr.mxu0 0.0
          %621 = vmatpush1.msra.mxu0 %v591
          %622 = vmatprep.subr.mxu0 0.0
          %623 = vmatpush1.msra.mxu0 %v590
          %624 = vmatprep.subr.mxu0 0.0
          %625 = vmatpush1.msra.mxu0 %v589
          %626 = vmatprep.subr.mxu0 0.0
          %627 = vmatpush1.msra.mxu0 %v588
          %628 = vmatprep.subr.mxu0 0.0
          %629 = vmatpush1.msra.mxu0 %v587
          %630 = vmatprep.subr.mxu0 0.0
          %631 = vmatpush1.msra.mxu0 %v586
          %632 = vmatprep.subr.mxu0 0.0
          %633 = vmatpush1.msra.mxu0 %v585
          %634 = vmatprep.subr.mxu0 0.0
          %635 = vmatpush1.msra.mxu0 %v584
          %636 = vmatprep.subr.mxu0 0.0
          %637 = vmatpush1.msra.mxu0 %v583
          %638 = vmatprep.subr.mxu0 0.0
          %639 = vmatpush2.msra.mxu0 0.0
          %640 = vmatprep.subr.mxu0 0.0
          %641 = vmatpush2.msra.mxu0 0.0
          %642 = vmatprep.subr.mxu0 0.0
          %643 = vmatpush2.msra.mxu0 0.0
          %644 = vmatprep.subr.mxu0 0.0
          %645 = vmatpush2.msra.mxu0 0.0
          %646 = vmatprep.subr.mxu0 0.0
          %647 = vmatpush2.msra.mxu0 0.0
          %648 = vmatprep.subr.mxu0 0.0
          %649 = vmatpush2.msra.mxu0 0.0
          %650 = vmatprep.subr.mxu0 0.0
          %651 = vmatpush2.msra.mxu0 0.0
          %652 = vmatprep.subr.mxu0 0.0
          %653 = vmatpush2.msra.mxu0 0.0
          %654 = vmatprep.subr.mxu0 0.0
          %655 = vmatpush2.msra.mxu0 0.0
          %656 = vmatprep.subr.mxu0 0.0
          %657 = vmatpush2.msra.mxu0 0.0
          %658 = vmatprep.subr.mxu0 0.0
          %659 = vmatpush2.msra.mxu0 0.0
          %660 = vmatprep.subr.mxu0 0.0
          %661 = vmatpush2.msra.mxu0 0.0
          %662 = vmatprep.subr.mxu0 0.0
          %663 = vmatpush2.msra.mxu0 0.0
          %664 = vmatprep.subr.mxu0 0.0
          %665 = vmatpush2.msra.mxu0 0.0
          %666 = vmatprep.subr.mxu0 0.0
          %667 = vmatpush2.msra.mxu0 0.0
          %668 = vmatprep.subr.mxu0 0.0
          %669 = vmatpush2.msra.mxu0 0.0
          %670 = vmatprep.mubr.f32.mxu0 0.0
          %671 = vmatmul.mubr.f32.gmra.mxu0 %v582
          %v672 = vpop.f32.mrf.mxu0
          %v673 = vadd.f32 %v604, %v672
          %v674 = vpop.f32.mrf.mxu0
          %675 = vdwg.mxu0
          %vm676 = vcmask 56320
          %v677 = vsel %vm676, %v673, -inf
          %678 = vmax.xlane.f32.xlu0 %v677
          %v679 = vpop.xlane.xlu0 %678
          %v680 = vsub.f32 %v673, %v679
          %v681 = vmul.f32 %v680, 1.442695
          %v682 = vpow.pop %v681
          %v683 = vsel %vm676, %v682, 0.0
          %684 = vadd.xlane.f32.xlu0 %v683
          %v685 = vpop.xlane.xlu0 %684
          %v686 = vrcp.pop %v685
          %v687 = vmul.f32 %v682, %v686
          %688 = vst.msk [vmem:[%s274] sm:$0xff] %vm676, %v687
        $region60: #{tpu_custom_call.1} parent=39 // pred_fallthru
          _
        %s689 = smul.u32 %s21, %s22
        %p690 = scmp.lt.s32.totalorder %s689, 1
        %s691 = scalar_select %p690, %s689, 1
        %s692 = smul.addr %s691, 8
        %s693 = scalar_lea.vmem %s5, %s692
        // Predicated region
        $region61: #{tpu_custom_call.1} parent=39 // pred_check
          %p694 = pneg %p165
        $region62: #{tpu_custom_call.1} parent=39 // pred_check_branch
          %696 = sbr.rel (%p694) target = $region64
        $region63: #{tpu_custom_call.1} parent=39 // pred_region
          %s697 = smul.u32 %s21, %s22
        $region64: #{tpu_custom_call.1} parent=39 // pred_fallthru
          _
      $region40: #{tpu_custom_call.1} parent=5 // pred_fallthru
        _
      %p698 = scmp.le.s32.totalorder 2, %s12
      // Predicated region
      $region65: #{tpu_custom_call.1} parent=5 // pred_check
        %p699 = pneg %p698
      $region66: #{tpu_custom_call.1} parent=5 // pred_check_branch
        %701 = sbr.rel (%p699) target = $region68
      $region67: #{tpu_custom_call.1} parent=5 // pred_region
        %s702 = ssub.s32 %s12, 2
        // Predicated region
        $region69: #{tpu_custom_call.1} parent=67 // pred_check
          %p703 = pneg %p171
        $region70: #{tpu_custom_call.1} parent=67 // pred_check_branch
          %705 = sbr.rel (%p703) target = $region72
        $region71: #{tpu_custom_call.1} parent=67 // pred_region
          %s706 = smul.u32 %s23, %s24
          %p707 = scmp.lt.s32.totalorder %s706, 1
          %s708 = scalar_select %p707, %s706, 1
          %s709 = smul.addr %s708, 8
          %s710 = scalar_lea.vmem %s5, %s709
        $region72: #{tpu_custom_call.1} parent=67 // pred_fallthru
          _
      $region68: #{tpu_custom_call.1} parent=5 // pred_fallthru
        _
    $region6: #{tpu_custom_call.1} parent=1 // loop_footer
      %s16 = sadd.s32 1, %s12
    $region7: #{tpu_custom_call.1} parent=1 // loop_footer_branch
      %11 = sbr.rel target = $region3
    $region8: #{tpu_custom_call.1} parent=1 // loop_exit
      _
    %711 = vsyncpa [#allocation6], 1
    %s712 = scalar_lea.sflag [#allocation6], 1
    %713 = vsyncpa %s712, 1

</llo_original>
